<compile_context>
chip_gen: v5e
topology: v5e:2x2
jax: 0.10.0
libtpu: 0.0.40
codegen_flags: <defaults>
</compile_context>

<pallas_src>
import functools

import jax
import jax.numpy as jnp
from jax import lax
from jax.experimental import pallas as pl
from jax.experimental.pallas import tpu as pltpu


_TILE_VMEM_BUDGET = 36 * 1024 * 1024   # budget used only for picking the batch tile


def _round_up(x, m):
    return ((x + m - 1) // m) * m


def _cdiv(a, b):
    return -(-a // b)


def _padded_bytes(shape, itemsize):
    """VMEM bytes of a 2-D block after (8, 128) sublane/lane padding."""
    r, c = shape[-2], shape[-1]
    return _round_up(r, 8) * _round_up(c, 128) * itemsize


def _mlp_kernel(n_linear, *refs):
    # refs = (x_ref, w0, b0, w1, b1, ..., w_{n-1}, b_{n-1}, out_ref)
    # x_ref:   [TILE_B, 16]   (native PyTorch layout; no host transpose)
    # w_i:     [out_i, in_i]  (PyTorch native layout)
    # b_i:     [out_i, 1]     (f32; lane-broadcast)
    # out_ref: [1, TILE_B]    (lane-dense output block)
    x_ref = refs[0]
    out_ref = refs[-1]
    prefs = refs[1:-1]

    x = x_ref[...]                                     # [TILE_B, 16]
    w0 = prefs[0][...]                                 # [W, 16]
    b0 = prefs[1][...]                                 # [W, 1]
    # First layer: contract the 16-feature dim of the [TILE_B, 16] block directly,
    # producing the batch-on-lanes activation [W, TILE_B] (no transpose of X needed).
    h = lax.dot_general(w0, x, (((1,), (1,)), ((), ())),
                        preferred_element_type=jnp.float32) + b0
    if n_linear > 1:
        h = jnp.maximum(h, 0.0)

    for i in range(1, n_linear):
        w = prefs[2 * i][...]                          # [out, in]
        b = prefs[2 * i + 1][...]                      # [out, 1]
        h = jnp.dot(w, h.astype(w.dtype), preferred_element_type=jnp.float32) + b
        if i < n_linear - 1:                           # ReLU after all but last
            h = jnp.maximum(h, 0.0)

    out_ref[...] = h.astype(out_ref.dtype)


def mlp_forward(x, weights, biases, *, tile_b=16384, compute_dtype=None):
    """x: [B, 16].  weights[i]: [out_i, in_i].  biases[i]: [out_i, 1].

    Returns [B, 1] f32, same semantics as the PyTorch module's forward.
    compute_dtype=jnp.bfloat16 (v6e/v7x) halves X/weight HBM traffic; accumulation
    stays f32.  Default (None) computes in x.dtype -> exact f32 parity.
    """
    B, in_dim = x.shape
    n_linear = len(weights)
    out_dim = int(weights[-1].shape[0])
    max_width = max(int(w.shape[0]) for w in weights)

    cdt = jnp.dtype(compute_dtype) if compute_dtype is not None else jnp.dtype(x.dtype)
    x_c = x if x.dtype == cdt else x.astype(cdt)
    params = []
    for w, b in zip(weights, biases):
        params.append(w if w.dtype == cdt else w.astype(cdt))
        params.append(b if b.dtype == jnp.float32 else b.astype(jnp.float32))
    x_itemsize = cdt.itemsize

    # ---- batch-tile selection (VMEM-budgeted, balanced, >=2 steps for big B) ----
    # per-column VMEM: double-buffered lane-padded X rows + a few live f32
    # activation columns + double-buffered output column.
    per_col = 2 * 128 * x_itemsize + 4 * _round_up(max_width, 8) * 4 + 2 * 8 * 4
    tile_cap = max(128, (_TILE_VMEM_BUDGET // per_col) // 128 * 128)
    tile = max(128, min(tile_b, tile_cap, _round_up(B, 128)))
    n_steps = _cdiv(B, tile)
    if n_steps == 1 and B > 1024:
        n_steps = 2                       # give v7x's second TensorCore a step
    tile = _round_up(_cdiv(B, n_steps), 128)
    num_tiles = _cdiv(B, tile)
    if num_tiles == 1:
        tile = B                          # single full-array block: no partial edges

    # ---- VMEM limit: actual need, clamped well below v7x's 64 MiB physical ----
    param_pad_bytes = sum(_padded_bytes(p.shape, p.dtype.itemsize) for p in params)
    single_buffer_params = param_pad_bytes > (4 << 20)   # only matters for big widths
    param_bufs = 1 if single_buffer_params else 2
    est = (2 * _padded_bytes((tile, in_dim), x_itemsize)
           + 2 * _padded_bytes((out_dim, tile), 4)
           + param_bufs * param_pad_bytes
           + 4 * _padded_bytes((max_width, tile), 4)
           + (4 << 20))
    vmem_limit = int(max(32 << 20, min(48 << 20, est)))

    # ---- cost estimate so XLA can schedule around this memory-bound call ----
    flops = 2 * B * sum(int(w.shape[0]) * int(w.shape[1]) for w in weights)
    bytes_accessed = (B * in_dim * x_itemsize + B * out_dim * 4
                      + sum(int(p.size) * p.dtype.itemsize for p in params))
    cost = pl.CostEstimate(flops=int(flops), transcendentals=0,
                           bytes_accessed=int(bytes_accessed))

    in_specs = [pl.BlockSpec((tile, in_dim), lambda i: (i, 0))]
    for p in params:
        if single_buffer_params:
            # Constant-index blocks: single-buffer large weights so 2x residency
            # can't blow VMEM (no extra DMA — the block never changes).
            in_specs.append(pl.BlockSpec(p.shape, lambda i: (0, 0),
                                         pipeline_mode=pl.Buffered(1)))
        else:
            in_specs.append(pl.BlockSpec(p.shape, lambda i: (0, 0)))

    out = pl.pallas_call(
        functools.partial(_mlp_kernel, n_linear),
        out_shape=jax.ShapeDtypeStruct((out_dim, B), jnp.float32),
        grid=(num_tiles,),
        in_specs=in_specs,
        out_specs=pl.BlockSpec((out_dim, tile), lambda i: (0, i)),
        compiler_params=pltpu.CompilerParams(
            dimension_semantics=("parallel",),   # batch steps shard over v7x's 2 TCs
            vmem_limit_bytes=vmem_limit,
        ),
        cost_estimate=cost,
    )(x_c, *params)

    # [1, B] -> [B, 1] (tiny; the lane-dense kernel output is the expensive part).
    return out.T


def init_params(key, width, depth):
    """Deterministic init mirroring torch.nn.Linear's layer shapes/layout."""
    dims = [16] + [width] * depth + [1]              # depth+1 linear layers
    weights, biases = [], []
    for i in range(len(dims) - 1):
        key, wk, bk = jax.random.split(key, 3)
        fan_in, fan_out = dims[i], dims[i + 1]
        bound = 1.0 / jnp.sqrt(fan_in)               # torch.nn.Linear default-ish
        w = jax.random.uniform(wk, (fan_out, fan_in), jnp.float32, -bound, bound)
        b = jax.random.uniform(bk, (fan_out, 1), jnp.float32, -bound, bound)
        weights.append(w)
        biases.append(b)
    return weights, biases


def reference_forward(x, weights, biases):
    """Plain-JAX reference of the same forward pass (PyTorch layout)."""
    h = x
    n = len(weights)
    for i, (w, b) in enumerate(zip(weights, biases)):
        h = h @ w.T + b.reshape(1, -1)
        if i < n - 1:
            h = jnp.maximum(h, 0.0)
    return h


if __name__ == "__main__":
    config = {"hidden_layer_width": 32, "depth": 3}
    width, depth = config["hidden_layer_width"], config["depth"]

    key = jax.random.PRNGKey(0)
    key, pk = jax.random.split(key)
    weights, biases = init_params(pk, width, depth)

    # 1) Small batch: single full-array block.
    key, xk = jax.random.split(key)
    x = jax.random.normal(xk, (8, 16), jnp.float32)
    out = jax.block_until_ready(mlp_forward(x, weights, biases))
    ref = reference_forward(x, weights, biases)
    assert out.shape == (8, 1), out.shape
    assert jnp.allclose(out, ref, atol=1e-4, rtol=1e-4)

    # 2) Non-multiple-of-128 batch with a small tile: multi-step grid with a
    #    partial (masked) edge block.
    key, xk2 = jax.random.split(key)
    x2 = jax.random.normal(xk2, (300, 16), jnp.float32)
    out2 = jax.block_until_ready(mlp_forward(x2, weights, biases, tile_b=128))
    ref2 = reference_forward(x2, weights, biases)
    assert out2.shape == (300, 1), out2.shape
    assert jnp.allclose(out2, ref2, atol=1e-4, rtol=1e-4)

    # 3) Larger batch with default tiling: exercises the >=2-step balancing path.
    key, xk3 = jax.random.split(key)
    x3 = jax.random.normal(xk3, (2048, 16), jnp.float32)
    out3 = jax.block_until_ready(mlp_forward(x3, weights, biases))
    ref3 = reference_forward(x3, weights, biases)
    assert out3.shape == (2048, 1), out3.shape
    assert jnp.allclose(out3, ref3, atol=1e-4, rtol=1e-4)

    # 4) bf16 compute path (v6e/v7x HBM-traffic optimization); f32 accumulation,
    #    relaxed tolerance vs. the f32 reference.
    out_bf = jax.block_until_ready(
        mlp_forward(x3, weights, biases, compute_dtype=jnp.bfloat16))
    assert out_bf.shape == (2048, 1), out_bf.shape
    assert jnp.allclose(out_bf, ref3, atol=3e-2, rtol=3e-2)

    print("KERNEL_OK")
</pallas_src>

<mosaic_0001>
module attributes {stable_mosaic.version = 11 : i64} {
  func.func @_mlp_kernel(%arg0: i32, %arg1: memref<8x16xf32, #tpu.memory_space<vmem>>, %arg2: memref<32x16xf32, #tpu.memory_space<vmem>>, %arg3: memref<32x1xf32, #tpu.memory_space<vmem>>, %arg4: memref<32x32xf32, #tpu.memory_space<vmem>>, %arg5: memref<32x1xf32, #tpu.memory_space<vmem>>, %arg6: memref<32x32xf32, #tpu.memory_space<vmem>>, %arg7: memref<32x1xf32, #tpu.memory_space<vmem>>, %arg8: memref<1x32xf32, #tpu.memory_space<vmem>>, %arg9: memref<1x1xf32, #tpu.memory_space<vmem>>, %arg10: memref<1x8xf32, #tpu.memory_space<vmem>>) attributes {dimension_semantics = [#tpu.dimension_semantics<parallel>], iteration_bounds = array<i64: 1>, scalar_prefetch = 0 : i64, scratch_operands = 0 : i64, tpu.core_type = #tpu.core_type<tc>, window_params = [{transform_indices = @transform_0, window_bounds = array<i64: 8, 16>}, {pipeline_mode = #tpu.pipeline_mode<synchronous>, transform_indices = @transform_1, window_bounds = array<i64: 32, 16>}, {pipeline_mode = #tpu.pipeline_mode<synchronous>, transform_indices = @transform_2, window_bounds = array<i64: 32, 1>}, {pipeline_mode = #tpu.pipeline_mode<synchronous>, transform_indices = @transform_3, window_bounds = array<i64: 32, 32>}, {pipeline_mode = #tpu.pipeline_mode<synchronous>, transform_indices = @transform_4, window_bounds = array<i64: 32, 1>}, {pipeline_mode = #tpu.pipeline_mode<synchronous>, transform_indices = @transform_5, window_bounds = array<i64: 32, 32>}, {pipeline_mode = #tpu.pipeline_mode<synchronous>, transform_indices = @transform_6, window_bounds = array<i64: 32, 1>}, {pipeline_mode = #tpu.pipeline_mode<synchronous>, transform_indices = @transform_7, window_bounds = array<i64: 1, 32>}, {pipeline_mode = #tpu.pipeline_mode<synchronous>, transform_indices = @transform_8, window_bounds = array<i64: 1, 1>}, {transform_indices = @transform_9, window_bounds = array<i64: 1, 8>}]} {
    %c0 = arith.constant 0 : index
    %c0_0 = arith.constant 0 : index
    %0 = vector.load %arg1[%c0, %c0_0] : memref<8x16xf32, #tpu.memory_space<vmem>>, vector<8x16xf32>
    %c0_1 = arith.constant 0 : index
    %c0_2 = arith.constant 0 : index
    %1 = vector.load %arg2[%c0_1, %c0_2] : memref<32x16xf32, #tpu.memory_space<vmem>>, vector<32x16xf32>
    %c0_3 = arith.constant 0 : index
    %c0_4 = arith.constant 0 : index
    %2 = vector.load %arg3[%c0_3, %c0_4] : memref<32x1xf32, #tpu.memory_space<vmem>>, vector<32x1xf32>
    %cst = arith.constant dense<0.000000e+00> : vector<32x8xf32>
    %3 = tpu.matmul %1, %0, %cst {dimension_numbers = #tpu.dot_dimension_numbers<[1], [1], [0], [0], [0, 0, 1, 0], [], []>} : vector<32x16xf32>, vector<8x16xf32>, vector<32x8xf32> -> vector<32x8xf32>
    %4 = vector.broadcast %2 : vector<32x1xf32> to vector<32x8xf32>
    %5 = arith.addf %3, %4 : vector<32x8xf32>
    %cst_5 = arith.constant 0.000000e+00 : f32
    %6 = vector.broadcast %cst_5 : f32 to vector<32x8xf32>
    %7 = arith.maximumf %5, %6 : vector<32x8xf32>
    %c0_6 = arith.constant 0 : index
    %c0_7 = arith.constant 0 : index
    %8 = vector.load %arg4[%c0_6, %c0_7] : memref<32x32xf32, #tpu.memory_space<vmem>>, vector<32x32xf32>
    %c0_8 = arith.constant 0 : index
    %c0_9 = arith.constant 0 : index
    %9 = vector.load %arg5[%c0_8, %c0_9] : memref<32x1xf32, #tpu.memory_space<vmem>>, vector<32x1xf32>
    %cst_10 = arith.constant dense<0.000000e+00> : vector<32x8xf32>
    %10 = tpu.matmul %8, %7, %cst_10 {dimension_numbers = #tpu.dot_dimension_numbers<[1], [0], [0], [1], [0, 0, 1, 1], [], []>} : vector<32x32xf32>, vector<32x8xf32>, vector<32x8xf32> -> vector<32x8xf32>
    %11 = vector.broadcast %9 : vector<32x1xf32> to vector<32x8xf32>
    %12 = arith.addf %10, %11 : vector<32x8xf32>
    %cst_11 = arith.constant 0.000000e+00 : f32
    %13 = vector.broadcast %cst_11 : f32 to vector<32x8xf32>
    %14 = arith.maximumf %12, %13 : vector<32x8xf32>
    %c0_12 = arith.constant 0 : index
    %c0_13 = arith.constant 0 : index
    %15 = vector.load %arg6[%c0_12, %c0_13] : memref<32x32xf32, #tpu.memory_space<vmem>>, vector<32x32xf32>
    %c0_14 = arith.constant 0 : index
    %c0_15 = arith.constant 0 : index
    %16 = vector.load %arg7[%c0_14, %c0_15] : memref<32x1xf32, #tpu.memory_space<vmem>>, vector<32x1xf32>
    %cst_16 = arith.constant dense<0.000000e+00> : vector<32x8xf32>
    %17 = tpu.matmul %15, %14, %cst_16 {dimension_numbers = #tpu.dot_dimension_numbers<[1], [0], [0], [1], [0, 0, 1, 1], [], []>} : vector<32x32xf32>, vector<32x8xf32>, vector<32x8xf32> -> vector<32x8xf32>
    %18 = vector.broadcast %16 : vector<32x1xf32> to vector<32x8xf32>
    %19 = arith.addf %17, %18 : vector<32x8xf32>
    %cst_17 = arith.constant 0.000000e+00 : f32
    %20 = vector.broadcast %cst_17 : f32 to vector<32x8xf32>
    %21 = arith.maximumf %19, %20 : vector<32x8xf32>
    %c0_18 = arith.constant 0 : index
    %c0_19 = arith.constant 0 : index
    %22 = vector.load %arg8[%c0_18, %c0_19] : memref<1x32xf32, #tpu.memory_space<vmem>>, vector<1x32xf32>
    %c0_20 = arith.constant 0 : index
    %c0_21 = arith.constant 0 : index
    %23 = vector.load %arg9[%c0_20, %c0_21] : memref<1x1xf32, #tpu.memory_space<vmem>>, vector<1x1xf32>
    %cst_22 = arith.constant dense<0.000000e+00> : vector<1x8xf32>
    %24 = tpu.matmul %22, %21, %cst_22 {dimension_numbers = #tpu.dot_dimension_numbers<[1], [0], [0], [1], [0, 0, 1, 1], [], []>} : vector<1x32xf32>, vector<32x8xf32>, vector<1x8xf32> -> vector<1x8xf32>
    %25 = vector.broadcast %23 : vector<1x1xf32> to vector<1x8xf32>
    %26 = arith.addf %24, %25 : vector<1x8xf32>
    %c0_23 = arith.constant 0 : index
    %c0_24 = arith.constant 0 : index
    %27 = vector.load %arg10[%c0_23, %c0_24] : memref<1x8xf32, #tpu.memory_space<vmem>>, vector<1x8xf32>
    tpu.vector_store %arg10[%c0_23, %c0_24], %26 {strides = array<i32>} : memref<1x8xf32, #tpu.memory_space<vmem>>, vector<1x8xf32>,
    return
  }
  func.func @transform_0(%arg0: i32) -> (i32, i32) {
    %c0_i32 = arith.constant 0 : i32
    %c0_i32_0 = arith.constant 0 : i32
    return %arg0, %c0_i32 : i32, i32
  }
  func.func @transform_1(%arg0: i32) -> (i32, i32) {
    %c0_i32 = arith.constant 0 : i32
    %c0_i32_0 = arith.constant 0 : i32
    %c0_i32_1 = arith.constant 0 : i32
    return %c0_i32, %c0_i32_0 : i32, i32
  }
  func.func @transform_2(%arg0: i32) -> (i32, i32) {
    %c0_i32 = arith.constant 0 : i32
    %c0_i32_0 = arith.constant 0 : i32
    %c0_i32_1 = arith.constant 0 : i32
    return %c0_i32, %c0_i32_0 : i32, i32
  }
  func.func @transform_3(%arg0: i32) -> (i32, i32) {
    %c0_i32 = arith.constant 0 : i32
    %c0_i32_0 = arith.constant 0 : i32
    %c0_i32_1 = arith.constant 0 : i32
    return %c0_i32, %c0_i32_0 : i32, i32
  }
  func.func @transform_4(%arg0: i32) -> (i32, i32) {
    %c0_i32 = arith.constant 0 : i32
    %c0_i32_0 = arith.constant 0 : i32
    %c0_i32_1 = arith.constant 0 : i32
    return %c0_i32, %c0_i32_0 : i32, i32
  }
  func.func @transform_5(%arg0: i32) -> (i32, i32) {
    %c0_i32 = arith.constant 0 : i32
    %c0_i32_0 = arith.constant 0 : i32
    %c0_i32_1 = arith.constant 0 : i32
    return %c0_i32, %c0_i32_0 : i32, i32
  }
  func.func @transform_6(%arg0: i32) -> (i32, i32) {
    %c0_i32 = arith.constant 0 : i32
    %c0_i32_0 = arith.constant 0 : i32
    %c0_i32_1 = arith.constant 0 : i32
    return %c0_i32, %c0_i32_0 : i32, i32
  }
  func.func @transform_7(%arg0: i32) -> (i32, i32) {
    %c0_i32 = arith.constant 0 : i32
    %c0_i32_0 = arith.constant 0 : i32
    %c0_i32_1 = arith.constant 0 : i32
    return %c0_i32, %c0_i32_0 : i32, i32
  }
  func.func @transform_8(%arg0: i32) -> (i32, i32) {
    %c0_i32 = arith.constant 0 : i32
    %c0_i32_0 = arith.constant 0 : i32
    %c0_i32_1 = arith.constant 0 : i32
    return %c0_i32, %c0_i32_0 : i32, i32
  }
  func.func @transform_9(%arg0: i32) -> (i32, i32) {
    %c0_i32 = arith.constant 0 : i32
    %c0_i32_0 = arith.constant 0 : i32
    return %c0_i32, %arg0 : i32, i32
  }
}

</mosaic_0001>

<llo_original>
// kernel: tpu_custom_call.1
$region0: #{tpu_custom_call.1}
  #allocation0 [shape = 'u32[]', space=smem, size = 0x4, offset = 0x4, fixed_abs, tag = 'smem constant byte address 0x4 - core index']
  #allocation1 [shape = 'u32[72,128]{1,0:T(1,128)}', space=vmem, size = 0x9000, scoped, tag = 'internal scratch']
  #allocation2 [shape = 'f32[1,1]{1,0:T(1,128)S(1)}', space=vmem, size = 0x200, scoped, tag = 'scoped memory for tpu_custom_call.1']
  %s0 = inlined_call_operand.vmem [shape: f32[8,16], index: 0, kind: input, shape index: {}]
  %s1 = inlined_call_operand.vmem [shape: f32[32,16], index: 1, kind: input, shape index: {}]
  %s2 = inlined_call_operand.vmem [shape: f32[32,1], index: 2, kind: input, shape index: {}]
  %s3 = inlined_call_operand.vmem [shape: f32[32,32], index: 3, kind: input, shape index: {}]
  %s4 = inlined_call_operand.vmem [shape: f32[32,1], index: 4, kind: input, shape index: {}]
  %s5 = inlined_call_operand.vmem [shape: f32[32,32], index: 5, kind: input, shape index: {}]
  %s6 = inlined_call_operand.vmem [shape: f32[32,1], index: 6, kind: input, shape index: {}]
  %s7 = inlined_call_operand.vmem [shape: f32[1,32], index: 7, kind: input, shape index: {}]
  %s8 = inlined_call_operand.<no memory space> [shape: f32[1,1], index: 8, kind: input, shape index: {}]
  %s9 = inlined_call_operand.hbm [shape: f32[1,8], index: 9, kind: output, shape index: {}]
  %s10 = sld [smem:[#allocation0]]
  $region46: #{tpu_custom_call.1} parent=0
    _
  %s12 = ssub.s32 1, %s10
  %s13 = scalar_select 0, %s12, %s10
  %v14 = vstv %s8
  %15 = vst [vmem:[#allocation2] sm:$0x1] %v14
  $region1: #{tpu_custom_call.1} parent=0
    #allocation3 [shape = 'u8[512]{0}', space=vmem, size = 0x400, scoped, tag = 'output window, operand 0, single buffered']
    #allocation4 [shape = 's32[1]{0}', space=sflag, size = 0x4, scoped, tag = 'scoped memory for tpu_custom_call.1']
    %16 = vsyncpa [#allocation4], 0
    // Predicated region
    $region2: #{tpu_custom_call.1} parent=1 // pred_check
      _
    $region3: #{tpu_custom_call.1} parent=1 // pred_check_branch
      %18 = sbr.rel (0) target = $region5
    $region4: #{tpu_custom_call.1} parent=1 // pred_region
      _
    $region5: #{tpu_custom_call.1} parent=1 // pred_fallthru
      _
    // Predicated region
    $region6: #{tpu_custom_call.1} parent=1 // pred_check
      _
    $region7: #{tpu_custom_call.1} parent=1 // pred_check_branch
      %20 = sbr.rel (0) target = $region9
    $region8: #{tpu_custom_call.1} parent=1 // pred_region
      _
    $region9: #{tpu_custom_call.1} parent=1 // pred_fallthru
      _
    // Predicated region
    $region10: #{tpu_custom_call.1} parent=1 // pred_check
      _
    $region11: #{tpu_custom_call.1} parent=1 // pred_check_branch
      %22 = sbr.rel (0) target = $region13
    $region12: #{tpu_custom_call.1} parent=1 // pred_region
      _
    $region13: #{tpu_custom_call.1} parent=1 // pred_fallthru
      _
    // Predicated region
    $region14: #{tpu_custom_call.1} parent=1 // pred_check
      _
    $region15: #{tpu_custom_call.1} parent=1 // pred_check_branch
      %24 = sbr.rel (0) target = $region17
    $region16: #{tpu_custom_call.1} parent=1 // pred_region
      _
    $region17: #{tpu_custom_call.1} parent=1 // pred_fallthru
      _
    // Predicated region
    $region18: #{tpu_custom_call.1} parent=1 // pred_check
      _
    $region19: #{tpu_custom_call.1} parent=1 // pred_check_branch
      %26 = sbr.rel (0) target = $region21
    $region20: #{tpu_custom_call.1} parent=1 // pred_region
      _
    $region21: #{tpu_custom_call.1} parent=1 // pred_fallthru
      _
    // Predicated region
    $region22: #{tpu_custom_call.1} parent=1 // pred_check
      _
    $region23: #{tpu_custom_call.1} parent=1 // pred_check_branch
      %28 = sbr.rel (0) target = $region25
    $region24: #{tpu_custom_call.1} parent=1 // pred_region
      _
    $region25: #{tpu_custom_call.1} parent=1 // pred_fallthru
      _
    // Predicated region
    $region26: #{tpu_custom_call.1} parent=1 // pred_check
      _
    $region27: #{tpu_custom_call.1} parent=1 // pred_check_branch
      %30 = sbr.rel (0) target = $region29
    $region28: #{tpu_custom_call.1} parent=1 // pred_region
      _
    $region29: #{tpu_custom_call.1} parent=1 // pred_fallthru
      _
    // Predicated region
    $region30: #{tpu_custom_call.1} parent=1 // pred_check
      _
    $region31: #{tpu_custom_call.1} parent=1 // pred_check_branch
      %32 = sbr.rel (0) target = $region33
    $region32: #{tpu_custom_call.1} parent=1 // pred_region
      _
    $region33: #{tpu_custom_call.1} parent=1 // pred_fallthru
      _
    // Predicated region
    $region34: #{tpu_custom_call.1} parent=1 // pred_check
      _
    $region35: #{tpu_custom_call.1} parent=1 // pred_check_branch
      %34 = sbr.rel (0) target = $region37
    $region36: #{tpu_custom_call.1} parent=1 // pred_region
      _
    $region37: #{tpu_custom_call.1} parent=1 // pred_fallthru
      _
    %v35 = vld [vmem:[%s0] sm:$0xff]
    %v36 = vld [vmem:[%s1] sm:$0xff]
    %v37 = vld [vmem:[%s1 + $0x8] sm:$0xff]
    %v38 = vld [vmem:[%s1 + $0x10] sm:$0xff]
    %v39 = vld [vmem:[%s1 + $0x18] sm:$0xff]
    %v40 = vld [vmem:[%s2] sm:$0xff]
    %v41 = vld [vmem:[%s2 + $0x8] sm:$0xff]
    %v42 = vld [vmem:[%s2 + $0x10] sm:$0xff]
    %v43 = vld [vmem:[%s2 + $0x18] sm:$0xff]
    %45 = vset.pattern.permute.xlu0 0
    %46 = vperm.xlu0 %45, %v40
    %v47 = vpop.permute.xlu0 %46
    %50 = vset.pattern.permute.xlu0 0
    %51 = vperm.xlu0 %50, %v41
    %v52 = vpop.permute.xlu0 %51
    %55 = vset.pattern.permute.xlu0 0
    %56 = vperm.xlu0 %55, %v42
    %v57 = vpop.permute.xlu0 %56
    %60 = vset.pattern.permute.xlu0 0
    %61 = vperm.xlu0 %60, %v43
    %v62 = vpop.permute.xlu0 %61
    %vm64 = vcmask 130048
    %v66 = vsel %vm64, %v36, 0
    %v69 = vsel %vm64, %v37, 0
    %v72 = vsel %vm64, %v38, 0
    %v75 = vsel %vm64, %v39, 0
    %v78 = vsel %vm64, %v35, 0
    %80 = vmatpush.xpose.msra.mxu0 0.0
    %81 = vmatpush.xpose.msra.mxu0 0.0
    %82 = vmatpush.xpose.msra.mxu0 0.0
    %83 = vmatpush.xpose.msra.mxu0 0.0
    %84 = vmatpush.xpose.msra.mxu0 0.0
    %85 = vmatpush.xpose.msra.mxu0 0.0
    %86 = vmatpush.xpose.msra.mxu0 0.0
    %87 = vmatpush.xpose.msra.mxu0 0.0
    %88 = vmatpush.xpose.msra.mxu0 0.0
    %89 = vmatpush.xpose.msra.mxu0 0.0
    %90 = vmatpush.xpose.msra.mxu0 0.0
    %91 = vmatpush.xpose.msra.mxu0 0.0
    %92 = vmatpush.xpose.msra.mxu0 0.0
    %93 = vmatpush.xpose.msra.mxu0 0.0
    %94 = vmatpush.xpose.msra.mxu0 0.0
    %95 = vmatpush.xpose.msra.mxu0 %v78
    %96 = vmatmul.f32.gmra.mxu0 %v66
    %v97 = vpop.f32.mrf.mxu0
    %v98 = vadd.f32 %v47, %v97
    %99 = vmatmul.f32.gmra.mxu0 %v69
    %v100 = vpop.f32.mrf.mxu0
    %v101 = vadd.f32 %v52, %v100
    %102 = vmatmul.f32.gmra.mxu0 %v72
    %v103 = vpop.f32.mrf.mxu0
    %v104 = vadd.f32 %v57, %v103
    %105 = vmatmul.f32.gmra.mxu0 %v75
    %v106 = vpop.f32.mrf.mxu0
    %v107 = vadd.f32 %v62, %v106
    %108 = vdwg.mxu0
    %v109 = vmax.f32 %v98, 0.0
    %v110 = vmax.f32 %v101, 0.0
    %v111 = vmax.f32 %v104, 0.0
    %v112 = vmax.f32 %v107, 0.0
    %v113 = vld [vmem:[%s3] sm:$0xff]
    %v114 = vld [vmem:[%s3 + $0x8] sm:$0xff]
    %v115 = vld [vmem:[%s3 + $0x10] sm:$0xff]
    %v116 = vld [vmem:[%s3 + $0x18] sm:$0xff]
    %v117 = vld [vmem:[%s4] sm:$0xff]
    %v118 = vld [vmem:[%s4 + $0x8] sm:$0xff]
    %v119 = vld [vmem:[%s4 + $0x10] sm:$0xff]
    %v120 = vld [vmem:[%s4 + $0x18] sm:$0xff]
    %122 = vset.pattern.permute.xlu0 0
    %123 = vperm.xlu0 %122, %v117
    %v124 = vpop.permute.xlu0 %123
    %127 = vset.pattern.permute.xlu0 0
    %128 = vperm.xlu0 %127, %v118
    %v129 = vpop.permute.xlu0 %128
    %132 = vset.pattern.permute.xlu0 0
    %133 = vperm.xlu0 %132, %v119
    %v134 = vpop.permute.xlu0 %133
    %137 = vset.pattern.permute.xlu0 0
    %138 = vperm.xlu0 %137, %v120
    %v139 = vpop.permute.xlu0 %138
    %vm141 = vcmask 261120
    %v143 = vsel %vm141, %v113, 0
    %v146 = vsel %vm141, %v114, 0
    %v149 = vsel %vm141, %v115, 0
    %v152 = vsel %vm141, %v116, 0
    %154 = vmatpush.msra.mxu0 0.0
    %155 = vmatpush.msra.mxu0 0.0
    %156 = vmatpush.msra.mxu0 0.0
    %157 = vmatpush.msra.mxu0 0.0
    %158 = vmatpush.msra.mxu0 0.0
    %159 = vmatpush.msra.mxu0 0.0
    %160 = vmatpush.msra.mxu0 0.0
    %161 = vmatpush.msra.mxu0 0.0
    %162 = vmatpush.msra.mxu0 0.0
    %163 = vmatpush.msra.mxu0 0.0
    %164 = vmatpush.msra.mxu0 0.0
    %165 = vmatpush.msra.mxu0 0.0
    %166 = vmatpush.msra.mxu0 %v112
    %167 = vmatpush.msra.mxu0 %v111
    %168 = vmatpush.msra.mxu0 %v110
    %169 = vmatpush.msra.mxu0 %v109
    %170 = vmatmul.f32.gmra.mxu0 %v143
    %v171 = vpop.f32.mrf.mxu0
    %v172 = vadd.f32 %v124, %v171
    %173 = vmatmul.f32.gmra.mxu0 %v146
    %v174 = vpop.f32.mrf.mxu0
    %v175 = vadd.f32 %v129, %v174
    %176 = vmatmul.f32.gmra.mxu0 %v149
    %v177 = vpop.f32.mrf.mxu0
    %v178 = vadd.f32 %v134, %v177
    %179 = vmatmul.f32.gmra.mxu0 %v152
    %v180 = vpop.f32.mrf.mxu0
    %v181 = vadd.f32 %v139, %v180
    %182 = vdwg.mxu0
    %v183 = vmax.f32 %v172, 0.0
    %v184 = vmax.f32 %v175, 0.0
    %v185 = vmax.f32 %v178, 0.0
    %v186 = vmax.f32 %v181, 0.0
    %v187 = vld [vmem:[%s5] sm:$0xff]
    %v188 = vld [vmem:[%s5 + $0x8] sm:$0xff]
    %v189 = vld [vmem:[%s5 + $0x10] sm:$0xff]
    %v190 = vld [vmem:[%s5 + $0x18] sm:$0xff]
    %v191 = vld [vmem:[%s6] sm:$0xff]
    %v192 = vld [vmem:[%s6 + $0x8] sm:$0xff]
    %v193 = vld [vmem:[%s6 + $0x10] sm:$0xff]
    %v194 = vld [vmem:[%s6 + $0x18] sm:$0xff]
    %196 = vset.pattern.permute.xlu0 0
    %197 = vperm.xlu0 %196, %v191
    %v198 = vpop.permute.xlu0 %197
    %201 = vset.pattern.permute.xlu0 0
    %202 = vperm.xlu0 %201, %v192
    %v203 = vpop.permute.xlu0 %202
    %206 = vset.pattern.permute.xlu0 0
    %207 = vperm.xlu0 %206, %v193
    %v208 = vpop.permute.xlu0 %207
    %211 = vset.pattern.permute.xlu0 0
    %212 = vperm.xlu0 %211, %v194
    %v213 = vpop.permute.xlu0 %212
    %v216 = vsel %vm141, %v187, 0
    %v219 = vsel %vm141, %v188, 0
    %v222 = vsel %vm141, %v189, 0
    %v225 = vsel %vm141, %v190, 0
    %227 = vmatpush.msra.mxu0 0.0
    %228 = vmatpush.msra.mxu0 0.0
    %229 = vmatpush.msra.mxu0 0.0
    %230 = vmatpush.msra.mxu0 0.0
    %231 = vmatpush.msra.mxu0 0.0
    %232 = vmatpush.msra.mxu0 0.0
    %233 = vmatpush.msra.mxu0 0.0
    %234 = vmatpush.msra.mxu0 0.0
    %235 = vmatpush.msra.mxu0 0.0
    %236 = vmatpush.msra.mxu0 0.0
    %237 = vmatpush.msra.mxu0 0.0
    %238 = vmatpush.msra.mxu0 0.0
    %239 = vmatpush.msra.mxu0 %v186
    %240 = vmatpush.msra.mxu0 %v185
    %241 = vmatpush.msra.mxu0 %v184
    %242 = vmatpush.msra.mxu0 %v183
    %243 = vmatmul.f32.gmra.mxu0 %v216
    %v244 = vpop.f32.mrf.mxu0
    %v245 = vadd.f32 %v198, %v244
    %246 = vmatmul.f32.gmra.mxu0 %v219
    %v247 = vpop.f32.mrf.mxu0
    %v248 = vadd.f32 %v203, %v247
    %249 = vmatmul.f32.gmra.mxu0 %v222
    %v250 = vpop.f32.mrf.mxu0
    %v251 = vadd.f32 %v208, %v250
    %252 = vmatmul.f32.gmra.mxu0 %v225
    %v253 = vpop.f32.mrf.mxu0
    %v254 = vadd.f32 %v213, %v253
    %255 = vdwg.mxu0
    %v256 = vmax.f32 %v245, 0.0
    %v257 = vmax.f32 %v248, 0.0
    %v258 = vmax.f32 %v251, 0.0
    %v259 = vmax.f32 %v254, 0.0
    %v260 = vld [vmem:[%s7] sm:$0x1]
    %v261 = vld [vmem:[#allocation2] sm:$0x1]
    %263 = vset.pattern.permute.xlu0 0
    %264 = vperm.xlu0 %263, %v261
    %v265 = vpop.permute.xlu0 %264
    %v267 = vperm.slane %v265, 0
    %v269 = vsel %vm141, %v260, 0
    %271 = vmatpush.msra.mxu0 0.0
    %272 = vmatpush.msra.mxu0 0.0
    %273 = vmatpush.msra.mxu0 0.0
    %274 = vmatpush.msra.mxu0 0.0
    %275 = vmatpush.msra.mxu0 0.0
    %276 = vmatpush.msra.mxu0 0.0
    %277 = vmatpush.msra.mxu0 0.0
    %278 = vmatpush.msra.mxu0 0.0
    %279 = vmatpush.msra.mxu0 0.0
    %280 = vmatpush.msra.mxu0 0.0
    %281 = vmatpush.msra.mxu0 0.0
    %282 = vmatpush.msra.mxu0 0.0
    %283 = vmatpush.msra.mxu0 %v259
    %284 = vmatpush.msra.mxu0 %v258
    %285 = vmatpush.msra.mxu0 %v257
    %286 = vmatpush.msra.mxu0 %v256
    %287 = vmatmul.f32.gmra.mxu0 %v269
    %v288 = vpop.f32.mrf.mxu0
    %v289 = vadd.f32 %v267, %v288
    %290 = vdwg.mxu0
    %vm291 = vcmask 57344
    %292 = vst.msk [vmem:[#allocation3] sm:$0x1] %vm291, %v289
    // Predicated region
    $region38: #{tpu_custom_call.1} parent=1 // pred_check
      _
    $region39: #{tpu_custom_call.1} parent=1 // pred_check_branch
      %294 = sbr.rel (0) target = $region41
    $region40: #{tpu_custom_call.1} parent=1 // pred_region
      %296 = vsyncadd [#allocation4], 0
      %s298 = sshll.u32 [#allocation3], 4
      %s299 = int_to_ptr.vmem [resolvable:$true] %s298
      %s300 = sshll.u32 %s9, 4
      %s301 = int_to_ptr.hbm [resolvable:$true] %s300
      %303 = dma.vmem_to_hbm [thread:$0]  %s299, 16, %s301, [#allocation4]
    $region41: #{tpu_custom_call.1} parent=1 // pred_fallthru
      _
    // Predicated region
    $region42: #{tpu_custom_call.1} parent=1 // pred_check
      _
    $region43: #{tpu_custom_call.1} parent=1 // pred_check_branch
      %305 = sbr.rel (0) target = $region45
    $region44: #{tpu_custom_call.1} parent=1 // pred_region
      %307 = dma.done [#allocation4], 16
    $region45: #{tpu_custom_call.1} parent=1 // pred_fallthru
      _
    %308 = vsyncpa [#allocation4], 1

</llo_original>
